<compile_context>
chip_gen: v7x
topology: tpu7x:2x2x1
jax: 0.10.0
libtpu: 0.0.40
codegen_flags: <defaults>
</compile_context>

<pallas_src>
import functools

import jax
import jax.numpy as jnp
from jax.experimental import pallas as pl
from jax.experimental.pallas import tpu as pltpu


_PAD_LOGIT = -1.0e4  # exp(-1e4) underflows to 0 -> padded elements contribute 0 loss.


def _focal_loss_kernel(x_ref, t_ref, out_ref, *, alpha, gamma, lanes, tile_rows):
    """Per-tile focal loss, accumulated into a vreg-shaped (8, lanes) partial sum."""
    i = pl.program_id(1)  # reduction axis ("arbitrary"); out block is resident across it

    @pl.when(i == 0)
    def _init():
        out_ref[...] = jnp.zeros_like(out_ref)

    # Cast to f32 on the VPU (inputs may be streamed as bf16 / int8).
    x = x_ref[...].astype(jnp.float32)
    t = t_ref[...].astype(jnp.float32)

    # Numerically-stable BCE-with-logits (matches F.binary_cross_entropy_with_logits):
    #   bce = max(x, 0) - x*t + log1p(exp(-|x|))
    e = jnp.exp(-jnp.abs(x))                       # single exp, reused below
    bce = jnp.maximum(x, 0.0) - x * t + jnp.log1p(e)

    # sigmoid(x) from the same e with one approx reciprocal (EUP) + one multiply:
    #   x >= 0 : 1 / (1 + e)        x < 0 : e / (1 + e)
    inv = pl.reciprocal(1.0 + e, approx=True)
    probs = jnp.where(x >= 0.0, inv, e * inv)

    pt = probs * t + (1.0 - probs) * (1.0 - t)
    one_minus_pt = 1.0 - pt

    # (1 - pt) ** gamma without a ones_like seed / exp+log for small int gamma.
    g = float(gamma)
    if g == 2.0:
        pw = one_minus_pt * one_minus_pt
    elif g == 0.0:
        pw = None
    elif g == int(g) and 1 <= int(g) <= 8:
        pw = one_minus_pt
        for _ in range(int(g) - 1):
            pw = pw * one_minus_pt
    else:
        pw = jnp.power(one_minus_pt, g)

    alpha_t = alpha * t + (1.0 - alpha) * (1.0 - t)
    focal_term = alpha_t if pw is None else alpha_t * pw
    loss = focal_term * bce

    # Fold (tile_rows, lanes) -> (8, lanes): reshape splits only the major dim
    # (layout no-op), the sum is plain vreg-wise VPU adds into the resident output.
    out_ref[...] += jnp.sum(loss.reshape(tile_rows // 8, 8, lanes), axis=0)


def _cdiv(a, b):
    return -(-a // b)


def _round_up(a, b):
    return _cdiv(a, b) * b


def _sublane_align(dtype):
    # Min sublane multiple for a (rows, 128) block of this dtype.
    return {4: 8, 2: 16, 1: 32}.get(jnp.dtype(dtype).itemsize, 8)


def _default_num_parallel():
    # Megacore split only helps on chips with 2 TensorCores per device (v7x);
    # on single-TC v5e/v6e it would only add padding and an extra init.
    try:
        kind = jax.devices()[0].device_kind.lower()
    except Exception:
        return 1
    return 2 if ("v7" in kind or "7x" in kind) else 1


def focal_loss(logits, targets, alpha=0.25, gamma=2.0, reduction="mean", *,
               lanes=128, max_tile_rows=4096, num_parallel=None):
    """Binary focal loss (with logits). Any input shape; 'mean' or 'sum' reduction."""
    assert logits.shape == targets.shape
    x = jnp.asarray(logits)
    t = jnp.asarray(targets)

    # Stream in the narrowest safe dtype; cast to f32 inside the kernel.
    if not jnp.issubdtype(x.dtype, jnp.floating):
        x = x.astype(jnp.float32)
    if not jnp.issubdtype(t.dtype, jnp.floating):
        t = t.astype(jnp.int8)          # bool / integer hard labels -> 1 byte/elem

    x = x.reshape(-1)
    t = t.reshape(-1)
    n_valid = x.size
    assert n_valid > 0

    if num_parallel is None:
        num_parallel = _default_num_parallel()

    # Row alignment must satisfy both streamed dtypes' min sublane tiling.
    row_align = max(_sublane_align(x.dtype), _sublane_align(t.dtype))
    max_tile_rows = max(row_align, (max_tile_rows // row_align) * row_align)

    C = lanes
    rows_needed = _cdiv(n_valid, C)
    rows_rounded = _round_up(rows_needed, row_align)

    # Adaptive tiling: bound padding to ~one alignment stripe per partition
    # instead of rounding up to a full max-size tile.
    P = num_parallel if rows_rounded >= num_parallel * row_align else 1
    rows_per_p = _round_up(_cdiv(rows_rounded, P), row_align)
    tiles_per_p = _cdiv(rows_per_p, max_tile_rows)
    tile_rows = min(max_tile_rows,
                    _round_up(_cdiv(rows_per_p, tiles_per_p), row_align))
    R = P * tiles_per_p * tile_rows

    pad = R * C - n_valid
    if pad:
        # Pad logits with a huge negative value and targets with 0: such elements
        # contribute exactly 0 loss, so no in-kernel validity mask is needed.
        x = jnp.pad(x, (0, pad), constant_values=float(_PAD_LOGIT))
        t = jnp.pad(t, (0, pad))
    x2 = x.reshape(R, C)
    t2 = t.reshape(R, C)

    kernel = functools.partial(
        _focal_loss_kernel,
        alpha=float(alpha),
        gamma=float(gamma),
        lanes=C,
        tile_rows=tile_rows,
    )

    if P > 1:
        # v7x only: genuinely shard the leading axis across both TensorCores.
        dims = (getattr(pltpu, "CORE_PARALLEL", "parallel"),
                getattr(pltpu, "ARBITRARY", "arbitrary"))
    else:
        dims = ("arbitrary", "arbitrary")

    partials = pl.pallas_call(
        kernel,
        out_shape=jax.ShapeDtypeStruct((P * 8, C), jnp.float32),
        grid_spec=pltpu.PrefetchScalarGridSpec(
            num_scalar_prefetch=0,
            grid=(P, tiles_per_p),
            in_specs=[
                pl.BlockSpec((tile_rows, C), lambda p, i: (p * tiles_per_p + i, 0)),
                pl.BlockSpec((tile_rows, C), lambda p, i: (p * tiles_per_p + i, 0)),
            ],
            out_specs=pl.BlockSpec((8, C), lambda p, i: (p, 0)),
        ),
        compiler_params=pltpu.CompilerParams(dimension_semantics=dims),
    )(x2, t2)

    total = jnp.sum(partials)
    if reduction == "mean":
        return total / jnp.float32(n_valid)
    elif reduction == "sum":
        return total
    else:
        # TODO(synk): reduction='none' (elementwise loss map) not implemented in this kernel.
        raise NotImplementedError("reduction must be 'mean' or 'sum'")


def focal_loss_ref(logits, targets, alpha=0.25, gamma=2.0):
    """Pure-JAX reference mirroring the PyTorch FocalLoss module (mean reduction)."""
    logits = jnp.asarray(logits, jnp.float32)
    targets = jnp.asarray(targets, jnp.float32)
    probs = jax.nn.sigmoid(logits)
    bce = (jnp.maximum(logits, 0.0) - logits * targets
           + jnp.log1p(jnp.exp(-jnp.abs(logits))))
    pt = probs * targets + (1 - probs) * (1 - targets)
    focal_term = (alpha * targets + (1 - alpha) * (1 - targets)) * (1 - pt) ** gamma
    return jnp.mean(focal_term * bce)


if __name__ == "__main__":
    key = jax.random.PRNGKey(0)
    k1, k2, k3, k4 = jax.random.split(key, 4)

    # Tolerance note: pl.reciprocal(approx=True) has ~2^-12 relative error per
    # element; the reduced (mean/sum) loss absorbs most of it, so 1e-3-level
    # rtol is the right check here.
    RTOL, ATOL = 2e-3, 1e-6

    # Case 1: f32 logits / f32 targets (batch=2, channels=4, 16x16 logit map).
    shape1 = (2, 4, 16, 16)
    logits1 = jax.random.normal(k1, shape1, dtype=jnp.float32) * 2.0
    targets1 = (jax.random.uniform(k2, shape1) > 0.5).astype(jnp.float32)

    out1 = jax.block_until_ready(focal_loss(logits1, targets1, alpha=0.25, gamma=2.0))
    ref1 = focal_loss_ref(logits1, targets1, alpha=0.25, gamma=2.0)
    assert jnp.allclose(out1, ref1, rtol=RTOL, atol=ATOL), (out1, ref1)

    # Case 2: ragged size with bf16 logits + bool targets (exercises narrow-dtype
    # streaming, padding with -1e4 logits, and int8 target path).
    shape2 = (5, 37)
    logits2 = (jax.random.normal(k3, shape2, dtype=jnp.float32) * 2.0).astype(jnp.bfloat16)
    targets2 = jax.random.uniform(k4, shape2) > 0.5   # bool -> streamed as int8

    out2 = jax.block_until_ready(focal_loss(logits2, targets2, alpha=0.25, gamma=2.0))
    ref2 = focal_loss_ref(logits2, targets2, alpha=0.25, gamma=2.0)
    assert jnp.allclose(out2, ref2, rtol=RTOL, atol=ATOL), (out2, ref2)

    # Case 3: 'sum' reduction.
    out3 = jax.block_until_ready(
        focal_loss(logits1, targets1, alpha=0.25, gamma=2.0, reduction="sum"))
    ref3 = focal_loss_ref(logits1, targets1, alpha=0.25, gamma=2.0) * logits1.size
    assert jnp.allclose(out3, ref3, rtol=RTOL, atol=1e-4), (out3, ref3)

    print("KERNEL_OK")
</pallas_src>

<mosaic_0001>
module attributes {stable_mosaic.version = 11 : i64} {
  func.func @_focal_loss_kernel(%arg0: i32, %arg1: i32, %arg2: memref<16x128xf32, #tpu.memory_space<vmem>>, %arg3: memref<16x128xf32, #tpu.memory_space<vmem>>, %arg4: memref<8x128xf32, #tpu.memory_space<vmem>>) attributes {dimension_semantics = [#tpu.dimension_semantics<arbitrary>, #tpu.dimension_semantics<arbitrary>], iteration_bounds = array<i64: 1, 1>, scalar_prefetch = 0 : i64, scratch_operands = 0 : i64, tpu.core_type = #tpu.core_type<tc>, window_params = [{transform_indices = @transform_0, window_bounds = array<i64: 16, 128>}, {transform_indices = @transform_1, window_bounds = array<i64: 16, 128>}, {transform_indices = @transform_2, window_bounds = array<i64: 8, 128>}]} {
    %c0_i32 = arith.constant 0 : i32
    %0 = arith.cmpi eq, %arg1, %c0_i32 : i32
    %1 = arith.extui %0 : i1 to i32
    %c0_i32_0 = arith.constant 0 : i32
    %2 = arith.cmpi ne, %1, %c0_i32_0 : i32
    scf.if %2 {
      %cst_18 = arith.constant 0.000000e+00 : f32
      %46 = vector.broadcast %cst_18 : f32 to vector<8x128xf32>
      %c0_19 = arith.constant 0 : index
      %c0_20 = arith.constant 0 : index
      %47 = vector.load %arg4[%c0_19, %c0_20] : memref<8x128xf32, #tpu.memory_space<vmem>>, vector<8x128xf32>
      tpu.vector_store %arg4[%c0_19, %c0_20], %46 {strides = array<i32>} : memref<8x128xf32, #tpu.memory_space<vmem>>, vector<8x128xf32>,
    } else {
    }
    %c0 = arith.constant 0 : index
    %c0_1 = arith.constant 0 : index
    %3 = vector.load %arg2[%c0, %c0_1] : memref<16x128xf32, #tpu.memory_space<vmem>>, vector<16x128xf32>
    %c0_2 = arith.constant 0 : index
    %c0_3 = arith.constant 0 : index
    %4 = vector.load %arg3[%c0_2, %c0_3] : memref<16x128xf32, #tpu.memory_space<vmem>>, vector<16x128xf32>
    %5 = math.absf %3 : vector<16x128xf32>
    %cst = arith.constant 0.000000e+00 : f32
    %6 = vector.broadcast %cst : f32 to vector<16x128xf32>
    %7 = arith.subf %6, %5 : vector<16x128xf32>
    %8 = math.exp %7 : vector<16x128xf32>
    %cst_4 = arith.constant 0.000000e+00 : f32
    %9 = vector.broadcast %cst_4 : f32 to vector<16x128xf32>
    %10 = arith.maximumf %3, %9 : vector<16x128xf32>
    %11 = arith.mulf %3, %4 : vector<16x128xf32>
    %12 = arith.subf %10, %11 : vector<16x128xf32>
    %13 = math.log1p %8 : vector<16x128xf32>
    %14 = arith.addf %12, %13 : vector<16x128xf32>
    %cst_5 = arith.constant 1.000000e+00 : f32
    %15 = vector.broadcast %cst_5 : f32 to vector<16x128xf32>
    %16 = arith.addf %15, %8 : vector<16x128xf32>
    %17 = tpu.reciprocal %16 {approx = true} : vector<16x128xf32> -> vector<16x128xf32>
    %cst_6 = arith.constant 0.000000e+00 : f32
    %18 = vector.broadcast %cst_6 : f32 to vector<16x128xf32>
    %19 = arith.cmpf oge, %3, %18 : vector<16x128xf32>
    %20 = arith.mulf %8, %17 : vector<16x128xf32>
    %21 = arith.select %19, %17, %20 : vector<16x128xi1>, vector<16x128xf32>
    %22 = arith.mulf %21, %4 : vector<16x128xf32>
    %cst_7 = arith.constant 1.000000e+00 : f32
    %23 = vector.broadcast %cst_7 : f32 to vector<16x128xf32>
    %24 = arith.subf %23, %21 : vector<16x128xf32>
    %cst_8 = arith.constant 1.000000e+00 : f32
    %25 = vector.broadcast %cst_8 : f32 to vector<16x128xf32>
    %26 = arith.subf %25, %4 : vector<16x128xf32>
    %27 = arith.mulf %24, %26 : vector<16x128xf32>
    %28 = arith.addf %22, %27 : vector<16x128xf32>
    %cst_9 = arith.constant 1.000000e+00 : f32
    %29 = vector.broadcast %cst_9 : f32 to vector<16x128xf32>
    %30 = arith.subf %29, %28 : vector<16x128xf32>
    %31 = arith.mulf %30, %30 : vector<16x128xf32>
    %cst_10 = arith.constant 2.500000e-01 : f32
    %32 = vector.broadcast %cst_10 : f32 to vector<16x128xf32>
    %33 = arith.mulf %32, %4 : vector<16x128xf32>
    %cst_11 = arith.constant 1.000000e+00 : f32
    %34 = vector.broadcast %cst_11 : f32 to vector<16x128xf32>
    %35 = arith.subf %34, %4 : vector<16x128xf32>
    %cst_12 = arith.constant 7.500000e-01 : f32
    %36 = vector.broadcast %cst_12 : f32 to vector<16x128xf32>
    %37 = arith.mulf %36, %35 : vector<16x128xf32>
    %38 = arith.addf %33, %37 : vector<16x128xf32>
    %39 = arith.mulf %38, %31 : vector<16x128xf32>
    %40 = arith.mulf %39, %14 : vector<16x128xf32>
    %c0_13 = arith.constant 0 : index
    %c0_14 = arith.constant 0 : index
    %41 = vector.load %arg4[%c0_13, %c0_14] : memref<8x128xf32, #tpu.memory_space<vmem>>, vector<8x128xf32>
    %42 = vector.shape_cast %40 : vector<16x128xf32> to vector<2x8x128xf32>
    %cst_15 = arith.constant dense<0.000000e+00> : vector<8x128xf32>
    %43 = vector.multi_reduction <add>, %42, %cst_15 [0] : vector<2x8x128xf32> to vector<8x128xf32>
    %44 = arith.addf %41, %43 : vector<8x128xf32>
    %c0_16 = arith.constant 0 : index
    %c0_17 = arith.constant 0 : index
    %45 = vector.load %arg4[%c0_16, %c0_17] : memref<8x128xf32, #tpu.memory_space<vmem>>, vector<8x128xf32>
    tpu.vector_store %arg4[%c0_16, %c0_17], %44 {strides = array<i32>} : memref<8x128xf32, #tpu.memory_space<vmem>>, vector<8x128xf32>,
    return
  }
  func.func @transform_0(%arg0: i32, %arg1: i32) -> (i32, i32) {
    %c1_i32 = arith.constant 1 : i32
    %0 = arith.muli %arg0, %c1_i32 : i32
    %1 = arith.addi %0, %arg1 : i32
    %c0_i32 = arith.constant 0 : i32
    %c0_i32_0 = arith.constant 0 : i32
    return %1, %c0_i32 : i32, i32
  }
  func.func @transform_1(%arg0: i32, %arg1: i32) -> (i32, i32) {
    %c1_i32 = arith.constant 1 : i32
    %0 = arith.muli %arg0, %c1_i32 : i32
    %1 = arith.addi %0, %arg1 : i32
    %c0_i32 = arith.constant 0 : i32
    %c0_i32_0 = arith.constant 0 : i32
    return %1, %c0_i32 : i32, i32
  }
  func.func @transform_2(%arg0: i32, %arg1: i32) -> (i32, i32) {
    %c0_i32 = arith.constant 0 : i32
    %c0_i32_0 = arith.constant 0 : i32
    return %arg0, %c0_i32 : i32, i32
  }
}

</mosaic_0001>

<llo_original>
// kernel: tpu_custom_call.1
$region0: #{tpu_custom_call.1}
  #allocation0 [shape = 'u32[]', space=smem, size = 0x4, offset = 0x4, fixed_abs, tag = 'smem constant byte address 0x4 - core index']
  #allocation1 [shape = 'u32[144,128]{1,0:T(1,128)}', space=vmem, size = 0x12000, scoped, tag = 'internal scratch']
  %s0 = inlined_call_operand.hbm [shape: f32[16,128], index: 0, kind: input, shape index: {}]
  %s1 = inlined_call_operand.hbm [shape: f32[16,128], index: 1, kind: input, shape index: {}]
  %s2 = inlined_call_operand.hbm [shape: f32[8,128], index: 2, kind: output, shape index: {}]
  %s3 = sld [smem:[#allocation0]]
  $region30: #{tpu_custom_call.1} parent=0
    _
  %s5 = ssub.s32 1, %s3
  %s6 = scalar_select 0, %s5, %s3
  $region1: #{tpu_custom_call.1} parent=0
    #allocation2 [shape = 'u8[8192]{0}', space=vmem, size = 0x2000, scoped, tag = 'input window, operand 0, single buffered']
    #allocation3 [shape = 's32[1]{0}', space=sflag, size = 0x4, scoped, tag = 'scoped memory for tpu_custom_call.1']
    #allocation4 [shape = 's32[1]{0}', space=sflag, size = 0x4, scoped, tag = 'scoped memory for tpu_custom_call.1']
    #allocation5 [shape = 'u8[8192]{0}', space=vmem, size = 0x2000, scoped, tag = 'input window, operand 1, single buffered']
    #allocation6 [shape = 's32[1]{0}', space=sflag, size = 0x4, scoped, tag = 'scoped memory for tpu_custom_call.1']
    #allocation7 [shape = 'u8[4096]{0}', space=vmem, size = 0x1000, scoped, tag = 'output window, operand 0, single buffered']
    %7 = vsyncpa [#allocation3], 0
    %8 = vsyncpa [#allocation6], 0
    %9 = vsyncpa [#allocation4], 0
    // Predicated region
    $region2: #{tpu_custom_call.1} parent=1 // pred_check
      _
    $region3: #{tpu_custom_call.1} parent=1 // pred_check_branch
      %11 = sbr.rel (0) target = $region5
    $region4: #{tpu_custom_call.1} parent=1 // pred_region
      %s12 = sadd.s32 0, 0
      %s13 = smul.u32 2, %s12
      %s15 = ssub.s32 256, 256
      %16 = vsyncadd [#allocation3], %s15
      %s17 = smul.addr %s13, 128
      %s18 = scalar_lea.hbm %s0, %s17
      %s19 = sshll.u32 [#allocation2], 4
      %s20 = int_to_ptr.vmem [resolvable:$true] %s19
      %25 = dma.hbm_to_vmem [thread:$0]  %s18, 256, %s20, [#allocation3], 128, 128, 8
    $region5: #{tpu_custom_call.1} parent=1 // pred_fallthru
      _
    // Predicated region
    $region6: #{tpu_custom_call.1} parent=1 // pred_check
      _
    $region7: #{tpu_custom_call.1} parent=1 // pred_check_branch
      %27 = sbr.rel (0) target = $region9
    $region8: #{tpu_custom_call.1} parent=1 // pred_region
      %s28 = sadd.s32 0, 0
      %s29 = smul.u32 2, %s28
      %s31 = ssub.s32 256, 256
      %32 = vsyncadd [#allocation6], %s31
      %s33 = smul.addr %s29, 128
      %s34 = scalar_lea.hbm %s1, %s33
      %s35 = sshll.u32 [#allocation5], 4
      %s36 = int_to_ptr.vmem [resolvable:$true] %s35
      %41 = dma.hbm_to_vmem [thread:$0]  %s34, 256, %s36, [#allocation6], 128, 128, 8
    $region9: #{tpu_custom_call.1} parent=1 // pred_fallthru
      _
    // Predicated region
    $region10: #{tpu_custom_call.1} parent=1 // pred_check
      _
    $region11: #{tpu_custom_call.1} parent=1 // pred_check_branch
      %43 = sbr.rel (0) target = $region13
    $region12: #{tpu_custom_call.1} parent=1 // pred_region
      %44 = dma.done [#allocation3], 256
    $region13: #{tpu_custom_call.1} parent=1 // pred_fallthru
      _
    // Predicated region
    $region14: #{tpu_custom_call.1} parent=1 // pred_check
      _
    $region15: #{tpu_custom_call.1} parent=1 // pred_check_branch
      %46 = sbr.rel (0) target = $region17
    $region16: #{tpu_custom_call.1} parent=1 // pred_region
      %47 = dma.done [#allocation6], 256
    $region17: #{tpu_custom_call.1} parent=1 // pred_fallthru
      _
    %s48 = sadd.s32 0, 0
    %s49 = smul.u32 2, %s48
    %s50 = sadd.s32 0, 0
    %s51 = smul.u32 2, %s50
    %p52 = scmp.eq.s32.totalorder 0, 0
    // Predicated region
    $region18: #{tpu_custom_call.1} parent=1 // pred_check
      %p53 = pneg %p52
    $region19: #{tpu_custom_call.1} parent=1 // pred_check_branch
      %55 = sbr.rel (%p53) target = $region21
    $region20: #{tpu_custom_call.1} parent=1 // pred_region
      %56 = vst [vmem:[#allocation7] sm:$0xff] 0.0
    $region21: #{tpu_custom_call.1} parent=1 // pred_fallthru
      _
    %v57 = vld [vmem:[#allocation2] sm:$0xff]
    %v58 = vld [vmem:[#allocation2 + $0x8] sm:$0xff]
    %v59 = vld [vmem:[#allocation5] sm:$0xff]
    %v60 = vld [vmem:[#allocation5 + $0x8] sm:$0xff]
    %v61 = vand.u32 2147483647, %v57
    %v62 = vand.u32 2147483647, %v58
    %v63 = vsub.f32 0.0, %v61
    %v64 = vsub.f32 0.0, %v62
    %v65 = vmul.f32 %v63, 1.442695
    %v66 = vpow.pop %v65
    %v67 = vmul.f32 %v64, 1.442695
    %v68 = vpow.pop %v67
    %v69 = vmax.f32 %v57, 0.0
    %v70 = vmax.f32 %v58, 0.0
    %v71 = vmul.f32 %v57, %v59
    %v72 = vmul.f32 %v58, %v60
    %v73 = vsub.f32 %v69, %v71
    %v74 = vsub.f32 %v70, %v72
    %v75 = vadd.f32 %v66, 1.0
    %v76 = vlog2.pop %v75
    %v77 = vmul.f32 %v76, 0.6931472
    %v78 = vmul.f32 -0.5, %v66
    %v79 = vadd.f32 %v78, 1.0
    %v80 = vmul.f32 %v79, %v66
    %v81 = vand.u32 2147483647, %v66
    %vm82 = vcmp.lt.f32.partialorder %v81, 0.0004427343
    %v83 = vsel %vm82, %v80, %v77
    %v84 = vadd.f32 %v68, 1.0
    %v85 = vlog2.pop %v84
    %v86 = vmul.f32 %v85, 0.6931472
    %v87 = vmul.f32 -0.5, %v68
    %v88 = vadd.f32 %v87, 1.0
    %v89 = vmul.f32 %v88, %v68
    %v90 = vand.u32 2147483647, %v68
    %vm91 = vcmp.lt.f32.partialorder %v90, 0.0004427343
    %v92 = vsel %vm91, %v89, %v86
    %v93 = vadd.f32 %v73, %v83
    %v94 = vadd.f32 %v74, %v92
    %v95 = vadd.f32 %v66, 1.0
    %v96 = vadd.f32 %v68, 1.0
    %v97 = vrcp.pop %v95
    %v98 = vrcp.pop %v96
    %vm99 = vcmp.ge.f32.partialorder %v57, 0.0
    %vm100 = vcmp.ge.f32.partialorder %v58, 0.0
    %v101 = vmul.f32 %v66, %v97
    %v102 = vmul.f32 %v68, %v98
    %v103 = vsel %vm99, %v97, %v101
    %v104 = vsel %vm100, %v98, %v102
    %v105 = vmul.f32 %v103, %v59
    %v106 = vmul.f32 %v104, %v60
    %v107 = vsub.f32 1.0, %v103
    %v108 = vsub.f32 1.0, %v104
    %v109 = vsub.f32 1.0, %v59
    %v110 = vsub.f32 1.0, %v60
    %v111 = vmul.f32 %v107, %v109
    %v112 = vmul.f32 %v108, %v110
    %v113 = vadd.f32 %v105, %v111
    %v114 = vadd.f32 %v106, %v112
    %v115 = vsub.f32 1.0, %v113
    %v116 = vsub.f32 1.0, %v114
    %v117 = vmul.f32 %v115, %v115
    %v118 = vmul.f32 %v116, %v116
    %v119 = vmul.f32 %v59, 0.25
    %v120 = vmul.f32 %v60, 0.25
    %v121 = vmul.f32 %v109, 0.75
    %v122 = vmul.f32 %v110, 0.75
    %v123 = vadd.f32 %v119, %v121
    %v124 = vadd.f32 %v120, %v122
    %v125 = vmul.f32 %v123, %v117
    %v126 = vmul.f32 %v124, %v118
    %v127 = vmul.f32 %v125, %v93
    %v128 = vmul.f32 %v126, %v94
    %v129 = vld [vmem:[#allocation7] sm:$0xff]
    %v130 = vadd.f32 %v127, %v128
    %v131 = vadd.f32 %v129, %v130
    %132 = vst [vmem:[#allocation7] sm:$0xff] %v131
    // Predicated region
    $region22: #{tpu_custom_call.1} parent=1 // pred_check
      _
    $region23: #{tpu_custom_call.1} parent=1 // pred_check_branch
      %134 = sbr.rel (0) target = $region25
    $region24: #{tpu_custom_call.1} parent=1 // pred_region
      %s136 = ssub.s32 128, 128
      %137 = vsyncadd [#allocation4], %s136
      %s139 = sshll.u32 [#allocation7], 4
      %s140 = int_to_ptr.vmem [resolvable:$true] %s139
      %142 = dma.vmem_to_hbm [thread:$0]  %s140, 128, %s2, [#allocation4]
    $region25: #{tpu_custom_call.1} parent=1 // pred_fallthru
      _
    // Predicated region
    $region26: #{tpu_custom_call.1} parent=1 // pred_check
      _
    $region27: #{tpu_custom_call.1} parent=1 // pred_check_branch
      %144 = sbr.rel (0) target = $region29
    $region28: #{tpu_custom_call.1} parent=1 // pred_region
      %145 = dma.done [#allocation4], 128
    $region29: #{tpu_custom_call.1} parent=1 // pred_fallthru
      _
    %146 = vsyncpa [#allocation3], 1
    %147 = vsyncpa [#allocation6], 1
    %148 = vsyncpa [#allocation4], 1

</llo_original>
